<compile_context>
chip_gen: v7x
topology: tpu7x:2x2x1
jax: 0.10.0
libtpu: 0.0.40
codegen_flags: <defaults>
</compile_context>

<pallas_src>
import functools

import jax
import jax.numpy as jnp
from jax.experimental import pallas as pl
from jax.experimental.pallas import tpu as pltpu

LANES = 128
MAX_BLOCK_ROWS_SUM = 4096   # 2 in x 2 buf x 2 MiB f32 = 8 MiB   (< 16 MiB v5e default)
MAX_BLOCK_ROWS_NONE = 2048  # 2 in + 1 out, double-buffered ~6 MiB f32 (< 16 MiB v5e)
SPLIT_ROWS = 1024           # above this, force >= 2 blocks so v7x megacore splits


def _focal_elements(x, t, *, alpha, gamma, logits):
    """Per-element focal loss in f32 (upcast from native dtype on the VPU)."""
    x = x.astype(jnp.float32)
    t = t.astype(jnp.float32)
    if logits:
        # Numerically stable BCE-with-logits (matches F.binary_cross_entropy_with_logits):
        #   bce = max(x, 0) - x*t + log1p(exp(-|x|))
        bce = jnp.maximum(x, 0.0) - x * t + jnp.log1p(jnp.exp(-jnp.abs(x)))
    else:
        # F.binary_cross_entropy clamps the log terms at -100.
        log_p = jnp.maximum(jnp.log(x), -100.0)
        log_1mp = jnp.maximum(jnp.log1p(-x), -100.0)
        bce = -(t * log_p + (1.0 - t) * log_1mp)
    pt = jnp.exp(-bce)
    w = 1.0 - pt
    # Integer-gamma fast paths: repeated multiplies instead of pow (which would
    # lower to exp(gamma*log(w)) -> 2 extra EUP ops per element).
    if gamma == 0.0:
        mod = None
    elif float(gamma).is_integer() and 1.0 <= float(gamma) <= 4.0:
        mod = w
        for _ in range(int(gamma) - 1):
            mod = mod * w
    else:
        mod = w ** gamma
    out = bce if mod is None else mod * bce
    if alpha != 1.0:
        out = alpha * out
    return out


def _focal_partial_sum_kernel(x_ref, t_ref, out_ref, *, alpha, gamma, logits,
                              n_blocks, rem_last, need_mask, out_rows):
    focal = _focal_elements(x_ref[...], t_ref[...],
                            alpha=alpha, gamma=gamma, logits=logits)

    def psum(f):
        if out_rows == 8:
            # (block_rows, 128) -> (g, 8, 128); sum over g = pure VALU vreg adds,
            # result is an aligned (8, 128) store.
            return jnp.sum(f.reshape(-1, 8, LANES), axis=0)
        return jnp.sum(f, axis=0, keepdims=True)   # tiny single-block fallback

    if not need_mask:
        out_ref[...] = psum(focal)
    else:
        is_last = pl.program_id(0) == (n_blocks - 1)

        @pl.when(jnp.logical_not(is_last))
        def _():
            out_ref[...] = psum(focal)

        @pl.when(is_last)
        def _():
            # Block-local index vs. compile-time threshold: no per-element int
            # math on full blocks, no int32 overflow for huge tensors.
            row = jax.lax.broadcasted_iota(jnp.int32, focal.shape, 0)
            col = jax.lax.broadcasted_iota(jnp.int32, focal.shape, 1)
            idx = row * LANES + col               # <= block_rows*128 < 2^31
            out_ref[...] = psum(jnp.where(idx < rem_last, focal, 0.0))


def _focal_elementwise_kernel(x_ref, t_ref, out_ref, *, alpha, gamma, logits):
    out_ref[...] = _focal_elements(
        x_ref[...], t_ref[...], alpha=alpha, gamma=gamma, logits=logits
    ).astype(out_ref.dtype)


def _lane_view(a):
    """Flatten to a lane-dense [rows, 128] view; pad only an unaligned tail."""
    flat = a.reshape(-1)
    rem = flat.size % LANES
    if rem:
        flat = jnp.pad(flat, (0, LANES - rem))  # rare; masked out in-kernel
    return flat.reshape(-1, LANES)


def _choose_block_rows(rows, max_block_rows):
    if rows <= SPLIT_ROWS:
        return rows                           # single full-extent block (always legal)
    if rows <= max_block_rows:
        # Force >= 2 blocks so v7x's two TensorCores both get work.
        half = (rows + 1) // 2
        return ((half + 7) // 8) * 8          # multiple of 8 for (8,128) tiling
    return max_block_rows                     # already a multiple of 8


def _transcendentals_per_elem(gamma, logits):
    base = 3 if logits else 4                 # exp/log1p/exp  (or log/log1p/exp + exp)
    if not (float(gamma).is_integer() and 0.0 <= float(gamma) <= 4.0):
        base += 2                             # generic pow -> exp(gamma*log(w))
    return base


def focal_loss(inputs, targets, alpha=1.0, gamma=2.0, logits=True,
               reduction="mean"):
    """Pallas TPU equivalent of FocalLoss(alpha, gamma, logits, reduction)."""
    assert inputs.shape == targets.shape, (inputs.shape, targets.shape)
    n_valid = int(inputs.size)
    out_dtype = (inputs.dtype if jnp.issubdtype(inputs.dtype, jnp.floating)
                 else jnp.float32)
    if n_valid == 0:
        if reduction == "mean":
            return jnp.float32(jnp.nan)       # matches torch.mean of empty tensor
        if reduction == "sum":
            return jnp.float32(0.0)
        return jnp.zeros(inputs.shape, out_dtype)

    x2 = _lane_view(inputs)                   # native dtype; f32 upcast in-kernel
    t2 = _lane_view(targets)
    rows = x2.shape[0]
    bytes_in = int(x2.size) * x2.dtype.itemsize + int(t2.size) * t2.dtype.itemsize
    n_trans = _transcendentals_per_elem(gamma, logits) * n_valid
    compiler_params = pltpu.CompilerParams(dimension_semantics=("parallel",))

    if reduction in ("mean", "sum"):
        block_rows = _choose_block_rows(rows, MAX_BLOCK_ROWS_SUM)
        n_blocks = pl.cdiv(rows, block_rows)
        need_mask = (n_blocks * block_rows * LANES) != n_valid
        rem_last = n_valid - (n_blocks - 1) * block_rows * LANES  # small Python int
        out_rows = 8 if (block_rows % 8 == 0) else 1              # aligned store when possible

        in_specs = [pl.BlockSpec((block_rows, LANES), lambda i: (i, 0)),
                    pl.BlockSpec((block_rows, LANES), lambda i: (i, 0))]
        kernel = functools.partial(
            _focal_partial_sum_kernel, alpha=float(alpha), gamma=float(gamma),
            logits=bool(logits), n_blocks=int(n_blocks), rem_last=int(rem_last),
            need_mask=bool(need_mask), out_rows=int(out_rows))

        partials = pl.pallas_call(
            kernel,
            out_shape=jax.ShapeDtypeStruct((out_rows * n_blocks, LANES), jnp.float32),
            grid_spec=pltpu.PrefetchScalarGridSpec(
                num_scalar_prefetch=0,
                grid=(n_blocks,),
                in_specs=in_specs,
                out_specs=pl.BlockSpec((out_rows, LANES), lambda i: (i, 0)),
            ),
            compiler_params=compiler_params,
            cost_estimate=pl.CostEstimate(
                flops=12 * n_valid,
                transcendentals=n_trans,
                bytes_accessed=bytes_in + int(out_rows * n_blocks) * LANES * 4),
        )(x2, t2)

        total = jnp.sum(partials)             # tiny: (8*n_blocks) x 128 f32
        if reduction == "mean":
            return total / jnp.float32(n_valid)
        return total

    if reduction == "none":
        block_rows = _choose_block_rows(rows, MAX_BLOCK_ROWS_NONE)
        n_blocks = pl.cdiv(rows, block_rows)
        in_specs = [pl.BlockSpec((block_rows, LANES), lambda i: (i, 0)),
                    pl.BlockSpec((block_rows, LANES), lambda i: (i, 0))]
        kernel = functools.partial(
            _focal_elementwise_kernel, alpha=float(alpha), gamma=float(gamma),
            logits=bool(logits))
        out_itemsize = jnp.dtype(out_dtype).itemsize
        out = pl.pallas_call(
            kernel,
            out_shape=jax.ShapeDtypeStruct((rows, LANES), out_dtype),
            grid_spec=pltpu.PrefetchScalarGridSpec(
                num_scalar_prefetch=0,
                grid=(n_blocks,),
                in_specs=in_specs,
                out_specs=pl.BlockSpec((block_rows, LANES), lambda i: (i, 0)),
            ),
            compiler_params=compiler_params,
            cost_estimate=pl.CostEstimate(
                flops=12 * n_valid,
                transcendentals=n_trans,
                bytes_accessed=bytes_in + int(rows) * LANES * out_itemsize),
        )(x2, t2)
        return out.reshape(-1)[:n_valid].reshape(inputs.shape)

    raise ValueError(f"unknown reduction: {reduction!r}")


def focal_loss_reference(inputs, targets, alpha=1.0, gamma=2.0, logits=True,
                         reduction="mean"):
    x = inputs.astype(jnp.float32)
    t = targets.astype(jnp.float32)
    if logits:
        bce = jnp.maximum(x, 0.0) - x * t + jnp.log1p(jnp.exp(-jnp.abs(x)))
    else:
        bce = -(t * jnp.maximum(jnp.log(x), -100.0)
                + (1.0 - t) * jnp.maximum(jnp.log1p(-x), -100.0))
    pt = jnp.exp(-bce)
    focal = alpha * (1.0 - pt) ** gamma * bce
    if reduction == "mean":
        return jnp.mean(focal)
    if reduction == "sum":
        return jnp.sum(focal)
    return focal


if __name__ == "__main__":
    key = jax.random.PRNGKey(0)
    k1, k2, k3, k4, k5, k6 = jax.random.split(key, 6)

    # 1) NCHW segmentation-style logits + binary targets (module default: mean).
    x1 = jax.random.normal(k1, (2, 4, 16, 16), dtype=jnp.float32) * 3.0
    t1 = (jax.random.uniform(k2, (2, 4, 16, 16)) > 0.5).astype(jnp.float32)

    got_mean = jax.block_until_ready(focal_loss(x1, t1, reduction="mean"))
    ref_mean = focal_loss_reference(x1, t1, reduction="mean")
    assert jnp.allclose(got_mean, ref_mean, rtol=1e-4, atol=1e-6), (got_mean, ref_mean)

    got_sum = jax.block_until_ready(focal_loss(x1, t1, reduction="sum"))
    ref_sum = focal_loss_reference(x1, t1, reduction="sum")
    assert jnp.allclose(got_sum, ref_sum, rtol=1e-4, atol=1e-3), (got_sum, ref_sum)

    got_none = jax.block_until_ready(focal_loss(x1, t1, reduction="none"))
    ref_none = focal_loss_reference(x1, t1, reduction="none")
    assert got_none.shape == x1.shape and got_none.dtype == x1.dtype
    assert jnp.allclose(got_none, ref_none, rtol=1e-4, atol=1e-6)

    # 2) Non-lane-aligned element count -> exercises the last-block tail mask.
    x2 = jax.random.normal(k3, (2, 3, 7, 11), dtype=jnp.float32)
    t2 = (jax.random.uniform(k4, (2, 3, 7, 11)) > 0.5).astype(jnp.float32)
    got2 = jax.block_until_ready(focal_loss(x2, t2, reduction="mean"))
    ref2 = focal_loss_reference(x2, t2, reduction="mean")
    assert jnp.allclose(got2, ref2, rtol=1e-4, atol=1e-6), (got2, ref2)

    # 3) Medium tensor (rows > SPLIT_ROWS) -> forced 2-block megacore split.
    kx, kt = jax.random.split(k3)
    x3 = jax.random.normal(kx, (2, 4, 128, 144), dtype=jnp.float32)
    t3 = (jax.random.uniform(kt, (2, 4, 128, 144)) > 0.5).astype(jnp.float32)
    got3 = jax.block_until_ready(focal_loss(x3, t3, reduction="mean"))
    ref3 = focal_loss_reference(x3, t3, reduction="mean")
    assert jnp.allclose(got3, ref3, rtol=1e-4, atol=1e-6), (got3, ref3)
    got3n = jax.block_until_ready(focal_loss(x3, t3, reduction="none"))
    assert jnp.allclose(got3n, focal_loss_reference(x3, t3, reduction="none"),
                        rtol=1e-4, atol=1e-6)

    # 4) Large tensor (rows > MAX_BLOCK_ROWS_SUM) with a partial last block.
    kx4, kt4 = jax.random.split(k5)
    x4 = jax.random.normal(kx4, (2, 4, 256, 260), dtype=jnp.float32)
    t4 = (jax.random.uniform(kt4, (2, 4, 256, 260)) > 0.5).astype(jnp.float32)
    got4 = jax.block_until_ready(focal_loss(x4, t4, reduction="sum"))
    ref4 = focal_loss_reference(x4, t4, reduction="sum")
    assert jnp.allclose(got4, ref4, rtol=1e-4, atol=1e-2), (got4, ref4)

    # 5) Non-default hyperparameters: probabilities input, alpha != 1, integer
    #    and fractional gamma fast/slow paths.
    p5 = jax.nn.sigmoid(jax.random.normal(k6, (2, 4, 16, 16), dtype=jnp.float32))
    t5 = (jax.random.uniform(k4, (2, 4, 16, 16)) > 0.5).astype(jnp.float32)
    for a, g, lg in ((0.25, 3.0, True), (1.0, 1.5, True), (0.5, 2.0, False)):
        xi = x1 if lg else p5
        gv = jax.block_until_ready(
            focal_loss(xi, t5, alpha=a, gamma=g, logits=lg, reduction="mean"))
        rv = focal_loss_reference(xi, t5, alpha=a, gamma=g, logits=lg, reduction="mean")
        assert jnp.allclose(gv, rv, rtol=1e-4, atol=1e-6), (a, g, lg, gv, rv)

    # 6) bf16 inputs: 'none' returns input dtype (PyTorch-consistent), reductions in f32.
    x6 = x1.astype(jnp.bfloat16)
    t6 = t1.astype(jnp.bfloat16)
    got6n = jax.block_until_ready(focal_loss(x6, t6, reduction="none"))
    assert got6n.dtype == jnp.bfloat16 and got6n.shape == x6.shape
    got6m = jax.block_until_ready(focal_loss(x6, t6, reduction="mean"))
    ref6m = focal_loss_reference(x6, t6, reduction="mean")
    assert jnp.allclose(got6m, ref6m, rtol=2e-2, atol=1e-3), (got6m, ref6m)

    print("KERNEL_OK")
</pallas_src>

<mosaic_0001>
module attributes {stable_mosaic.version = 11 : i64} {
  func.func @_focal_partial_sum_kernel(%arg0: i32, %arg1: memref<16x128xf32, #tpu.memory_space<vmem>>, %arg2: memref<16x128xf32, #tpu.memory_space<vmem>>, %arg3: memref<8x128xf32, #tpu.memory_space<vmem>>) attributes {dimension_semantics = [#tpu.dimension_semantics<parallel>], iteration_bounds = array<i64: 1>, scalar_prefetch = 0 : i64, scratch_operands = 0 : i64, tpu.core_type = #tpu.core_type<tc>, window_params = [{transform_indices = @transform_0, window_bounds = array<i64: 16, 128>}, {transform_indices = @transform_1, window_bounds = array<i64: 16, 128>}, {transform_indices = @transform_2, window_bounds = array<i64: 8, 128>}]} {
    %c0 = arith.constant 0 : index
    %c0_0 = arith.constant 0 : index
    %0 = vector.load %arg1[%c0, %c0_0] : memref<16x128xf32, #tpu.memory_space<vmem>>, vector<16x128xf32>
    %c0_1 = arith.constant 0 : index
    %c0_2 = arith.constant 0 : index
    %1 = vector.load %arg2[%c0_1, %c0_2] : memref<16x128xf32, #tpu.memory_space<vmem>>, vector<16x128xf32>
    %cst = arith.constant 0.000000e+00 : f32
    %2 = vector.broadcast %cst : f32 to vector<16x128xf32>
    %3 = arith.maximumf %0, %2 : vector<16x128xf32>
    %4 = arith.mulf %0, %1 : vector<16x128xf32>
    %5 = arith.subf %3, %4 : vector<16x128xf32>
    %6 = math.absf %0 : vector<16x128xf32>
    %cst_3 = arith.constant 0.000000e+00 : f32
    %7 = vector.broadcast %cst_3 : f32 to vector<16x128xf32>
    %8 = arith.subf %7, %6 : vector<16x128xf32>
    %9 = math.exp %8 : vector<16x128xf32>
    %10 = math.log1p %9 : vector<16x128xf32>
    %11 = arith.addf %5, %10 : vector<16x128xf32>
    %cst_4 = arith.constant 0.000000e+00 : f32
    %12 = vector.broadcast %cst_4 : f32 to vector<16x128xf32>
    %13 = arith.subf %12, %11 : vector<16x128xf32>
    %14 = math.exp %13 : vector<16x128xf32>
    %cst_5 = arith.constant 1.000000e+00 : f32
    %15 = vector.broadcast %cst_5 : f32 to vector<16x128xf32>
    %16 = arith.subf %15, %14 : vector<16x128xf32>
    %17 = arith.mulf %16, %16 : vector<16x128xf32>
    %18 = arith.mulf %17, %11 : vector<16x128xf32>
    %19 = vector.shape_cast %18 : vector<16x128xf32> to vector<2x8x128xf32>
    %cst_6 = arith.constant dense<0.000000e+00> : vector<8x128xf32>
    %20 = vector.multi_reduction <add>, %19, %cst_6 [0] : vector<2x8x128xf32> to vector<8x128xf32>
    %c0_7 = arith.constant 0 : index
    %c0_8 = arith.constant 0 : index
    %21 = vector.load %arg3[%c0_7, %c0_8] : memref<8x128xf32, #tpu.memory_space<vmem>>, vector<8x128xf32>
    tpu.vector_store %arg3[%c0_7, %c0_8], %20 {strides = array<i32>} : memref<8x128xf32, #tpu.memory_space<vmem>>, vector<8x128xf32>,
    return
  }
  func.func @transform_0(%arg0: i32) -> (i32, i32) {
    %c0_i32 = arith.constant 0 : i32
    %c0_i32_0 = arith.constant 0 : i32
    return %arg0, %c0_i32 : i32, i32
  }
  func.func @transform_1(%arg0: i32) -> (i32, i32) {
    %c0_i32 = arith.constant 0 : i32
    %c0_i32_0 = arith.constant 0 : i32
    return %arg0, %c0_i32 : i32, i32
  }
  func.func @transform_2(%arg0: i32) -> (i32, i32) {
    %c0_i32 = arith.constant 0 : i32
    %c0_i32_0 = arith.constant 0 : i32
    return %arg0, %c0_i32 : i32, i32
  }
}

</mosaic_0001>

<llo_original>
// kernel: tpu_custom_call.1
$region0: #{tpu_custom_call.1}
  #allocation0 [shape = 'u32[]', space=smem, size = 0x4, offset = 0x4, fixed_abs, tag = 'smem constant byte address 0x4 - core index']
  #allocation1 [shape = 'u32[144,128]{1,0:T(1,128)}', space=vmem, size = 0x12000, scoped, tag = 'internal scratch']
  %s0 = inlined_call_operand.hbm [shape: f32[16,128], index: 0, kind: input, shape index: {}]
  %s1 = inlined_call_operand.hbm [shape: f32[16,128], index: 1, kind: input, shape index: {}]
  %s2 = inlined_call_operand.hbm [shape: f32[8,128], index: 2, kind: output, shape index: {}]
  %s3 = sld [smem:[#allocation0]]
  $region26: #{tpu_custom_call.1} parent=0
    _
  %s5 = ssub.s32 1, %s3
  %s6 = scalar_select 0, %s5, %s3
  $region1: #{tpu_custom_call.1} parent=0
    #allocation2 [shape = 'u8[8192]{0}', space=vmem, size = 0x2000, scoped, tag = 'input window, operand 0, single buffered']
    #allocation3 [shape = 's32[1]{0}', space=sflag, size = 0x4, scoped, tag = 'scoped memory for tpu_custom_call.1']
    #allocation4 [shape = 's32[1]{0}', space=sflag, size = 0x4, scoped, tag = 'scoped memory for tpu_custom_call.1']
    #allocation5 [shape = 'u8[8192]{0}', space=vmem, size = 0x2000, scoped, tag = 'input window, operand 1, single buffered']
    #allocation6 [shape = 's32[1]{0}', space=sflag, size = 0x4, scoped, tag = 'scoped memory for tpu_custom_call.1']
    #allocation7 [shape = 'u8[4096]{0}', space=vmem, size = 0x1000, scoped, tag = 'output window, operand 0, single buffered']
    %7 = vsyncpa [#allocation3], 0
    %8 = vsyncpa [#allocation6], 0
    %9 = vsyncpa [#allocation4], 0
    // Predicated region
    $region2: #{tpu_custom_call.1} parent=1 // pred_check
      _
    $region3: #{tpu_custom_call.1} parent=1 // pred_check_branch
      %11 = sbr.rel (0) target = $region5
    $region4: #{tpu_custom_call.1} parent=1 // pred_region
      %s13 = ssub.s32 256, 256
      %14 = vsyncadd [#allocation3], %s13
      %s15 = sshll.u32 [#allocation2], 4
      %s16 = int_to_ptr.vmem [resolvable:$true] %s15
      %21 = dma.hbm_to_vmem [thread:$0]  %s0, 256, %s16, [#allocation3], 128, 128, 8
    $region5: #{tpu_custom_call.1} parent=1 // pred_fallthru
      _
    // Predicated region
    $region6: #{tpu_custom_call.1} parent=1 // pred_check
      _
    $region7: #{tpu_custom_call.1} parent=1 // pred_check_branch
      %23 = sbr.rel (0) target = $region9
    $region8: #{tpu_custom_call.1} parent=1 // pred_region
      %s25 = ssub.s32 256, 256
      %26 = vsyncadd [#allocation6], %s25
      %s27 = sshll.u32 [#allocation5], 4
      %s28 = int_to_ptr.vmem [resolvable:$true] %s27
      %33 = dma.hbm_to_vmem [thread:$0]  %s1, 256, %s28, [#allocation6], 128, 128, 8
    $region9: #{tpu_custom_call.1} parent=1 // pred_fallthru
      _
    // Predicated region
    $region10: #{tpu_custom_call.1} parent=1 // pred_check
      _
    $region11: #{tpu_custom_call.1} parent=1 // pred_check_branch
      %35 = sbr.rel (0) target = $region13
    $region12: #{tpu_custom_call.1} parent=1 // pred_region
      %36 = dma.done [#allocation3], 256
    $region13: #{tpu_custom_call.1} parent=1 // pred_fallthru
      _
    // Predicated region
    $region14: #{tpu_custom_call.1} parent=1 // pred_check
      _
    $region15: #{tpu_custom_call.1} parent=1 // pred_check_branch
      %38 = sbr.rel (0) target = $region17
    $region16: #{tpu_custom_call.1} parent=1 // pred_region
      %39 = dma.done [#allocation6], 256
    $region17: #{tpu_custom_call.1} parent=1 // pred_fallthru
      _
    %v40 = vld [vmem:[#allocation2] sm:$0xff]
    %v41 = vld [vmem:[#allocation2 + $0x8] sm:$0xff]
    %v42 = vld [vmem:[#allocation5] sm:$0xff]
    %v43 = vld [vmem:[#allocation5 + $0x8] sm:$0xff]
    %v44 = vmax.f32 %v40, 0.0
    %v45 = vmax.f32 %v41, 0.0
    %v46 = vmul.f32 %v40, %v42
    %v47 = vmul.f32 %v41, %v43
    %v48 = vsub.f32 %v44, %v46
    %v49 = vsub.f32 %v45, %v47
    %v50 = vand.u32 2147483647, %v40
    %v51 = vand.u32 2147483647, %v41
    %v52 = vsub.f32 0.0, %v50
    %v53 = vsub.f32 0.0, %v51
    %v54 = vmul.f32 %v52, 1.442695
    %v55 = vpow.pop %v54
    %v56 = vmul.f32 %v53, 1.442695
    %v57 = vpow.pop %v56
    %v58 = vadd.f32 %v55, 1.0
    %v59 = vlog2.pop %v58
    %v60 = vmul.f32 %v59, 0.6931472
    %v61 = vmul.f32 -0.5, %v55
    %v62 = vadd.f32 %v61, 1.0
    %v63 = vmul.f32 %v62, %v55
    %v64 = vand.u32 2147483647, %v55
    %vm65 = vcmp.lt.f32.partialorder %v64, 0.0004427343
    %v66 = vsel %vm65, %v63, %v60
    %v67 = vadd.f32 %v57, 1.0
    %v68 = vlog2.pop %v67
    %v69 = vmul.f32 %v68, 0.6931472
    %v70 = vmul.f32 -0.5, %v57
    %v71 = vadd.f32 %v70, 1.0
    %v72 = vmul.f32 %v71, %v57
    %v73 = vand.u32 2147483647, %v57
    %vm74 = vcmp.lt.f32.partialorder %v73, 0.0004427343
    %v75 = vsel %vm74, %v72, %v69
    %v76 = vadd.f32 %v48, %v66
    %v77 = vadd.f32 %v49, %v75
    %v78 = vsub.f32 0.0, %v76
    %v79 = vsub.f32 0.0, %v77
    %v80 = vmul.f32 %v78, 1.442695
    %v81 = vpow.pop %v80
    %v82 = vmul.f32 %v79, 1.442695
    %v83 = vpow.pop %v82
    %v84 = vsub.f32 1.0, %v81
    %v85 = vsub.f32 1.0, %v83
    %v86 = vmul.f32 %v84, %v84
    %v87 = vmul.f32 %v85, %v85
    %v88 = vmul.f32 %v86, %v76
    %v89 = vmul.f32 %v87, %v77
    %v90 = vadd.f32 %v88, %v89
    %91 = vst [vmem:[#allocation7] sm:$0xff] %v90
    // Predicated region
    $region18: #{tpu_custom_call.1} parent=1 // pred_check
      _
    $region19: #{tpu_custom_call.1} parent=1 // pred_check_branch
      %93 = sbr.rel (0) target = $region21
    $region20: #{tpu_custom_call.1} parent=1 // pred_region
      %s95 = ssub.s32 128, 128
      %96 = vsyncadd [#allocation4], %s95
      %s98 = sshll.u32 [#allocation7], 4
      %s99 = int_to_ptr.vmem [resolvable:$true] %s98
      %101 = dma.vmem_to_hbm [thread:$0]  %s99, 128, %s2, [#allocation4]
    $region21: #{tpu_custom_call.1} parent=1 // pred_fallthru
      _
    // Predicated region
    $region22: #{tpu_custom_call.1} parent=1 // pred_check
      _
    $region23: #{tpu_custom_call.1} parent=1 // pred_check_branch
      %103 = sbr.rel (0) target = $region25
    $region24: #{tpu_custom_call.1} parent=1 // pred_region
      %104 = dma.done [#allocation4], 128
    $region25: #{tpu_custom_call.1} parent=1 // pred_fallthru
      _
    %105 = vsyncpa [#allocation3], 1
    %106 = vsyncpa [#allocation6], 1
    %107 = vsyncpa [#allocation4], 1

</llo_original>
